<compile_context>
chip_gen: v7x
topology: tpu7x:2x2x1
jax: 0.10.0
libtpu: 0.0.40
codegen_flags: <defaults>
</compile_context>

<pallas_src>
import jax
import jax.numpy as jnp
from jax.experimental import pallas as pl
from jax.experimental.pallas import tpu as pltpu


# ----------------------------------------------------------------------------
# Kernel: for one batch block, one timestep of
#   x=[s|a] -> Linear+ReLU -> GRUCell -> Linear(1)
# with the hidden state carried across the T grid axis in VMEM scratch.
# ----------------------------------------------------------------------------
def rnn_qnet_kernel(
    s_ref, a_ref, h0_ref,      # streamed states/actions, initial hidden
    w1_ref,                    # packed l1 weight (S+A, H)
    wg_ref,                    # packed GRU weight (2H, 4H): cols [r|z|gi_n|gh_n]
    vec_ref,                   # packed vectors (2, 4H): row0=gate bias,
                               #   row1=[b1 | w2 | b2 | 0-pad]
    q_ref, hfin_ref,           # outputs: per-step q, final hidden
    h_acc,                     # VMEM f32 scratch: hidden-state carry
):
    H = h0_ref.shape[-1]
    S = s_ref.shape[-1]
    A = a_ref.shape[-1]
    t = pl.program_id(1)

    # Initialize the carry at the first timestep of this batch block.
    @pl.when(t == 0)
    def _():
        h_acc[...] = h0_ref[...].astype(jnp.float32)

    h = h_acc[...]                                        # (bm, H) f32

    # ---- l1 + ReLU: [s|a] @ W1 + b1, concat folded into two MXU pushes -----
    b1 = vec_ref[1:2, 0:H]                                # (1, H)
    act = (
        jnp.dot(s_ref[...], w1_ref[0:S, :], preferred_element_type=jnp.float32)
        + jnp.dot(a_ref[...], w1_ref[S:S + A, :], preferred_element_type=jnp.float32)
        + b1
    )
    act = jnp.maximum(act, 0.0)                           # (bm, H) f32

    # ---- GRUCell: one packed (2H, 4H) weight, lane-dense N=4H gates ---------
    #   g columns = [ gi_r+gh_r | gi_z+gh_z | gi_n | gh_n ]  (biases included)
    bg = vec_ref[0:1, :]                                  # (1, 4H)
    cd = wg_ref.dtype
    g = (
        jnp.dot(act.astype(cd), wg_ref[0:H, :], preferred_element_type=jnp.float32)
        + jnp.dot(h.astype(cd), wg_ref[H:2 * H, :], preferred_element_type=jnp.float32)
        + bg
    )                                                     # (bm, 4H) f32

    rz = jax.nn.sigmoid(g[:, 0:2 * H])                    # one EUP pass for r,z
    r = rz[:, 0:H]
    z = rz[:, H:2 * H]
    n = jnp.tanh(g[:, 2 * H:3 * H] + r * g[:, 3 * H:4 * H])
    h_new = n + z * (h - n)                               # == (1-z)*n + z*h
    h_acc[...] = h_new                                    # carry to t+1

    # ---- l2 on VPU/XLU: broadcast-mul + lane reduce (no N=1 MXU matmul) -----
    w2 = vec_ref[1:2, H:2 * H]                            # (1, H)
    b2 = vec_ref[1:2, 2 * H:2 * H + 1]                    # (1, 1)
    q = jnp.sum(h_new * w2, axis=-1, keepdims=True) + b2  # (bm, 1)

    q_ref[...] = q.astype(q_ref.dtype)
    hfin_ref[...] = h_new.astype(hfin_ref.dtype)          # last write wins


# ----------------------------------------------------------------------------
# Parameter init (PyTorch-equivalent layouts) and packing for the kernel.
#   nn.Linear : xavier_uniform_ weight (gain=1), bias = 0      (weights_init)
#   nn.GRUCell: uniform(-1/sqrt(H), 1/sqrt(H)) for all weights & biases
# ----------------------------------------------------------------------------
def init_params(key, num_inputs, num_actions, hidden_dim, dtype=jnp.float32):
    S, A, H = num_inputs, num_actions, hidden_dim
    k = jax.random.split(key, 6)

    def xavier_t(kk, fan_in, fan_out):
        bound = (6.0 / (fan_in + fan_out)) ** 0.5
        w = jax.random.uniform(kk, (fan_out, fan_in), dtype, -bound, bound)  # torch (out,in)
        return w.T                                                            # (in, out)

    gb = 1.0 / (H ** 0.5)
    u = lambda kk, shape: jax.random.uniform(kk, shape, dtype, -gb, gb)

    return dict(
        w1=xavier_t(k[0], S + A, H),       # (S+A, H)
        b1=jnp.zeros((H,), dtype),
        w_ih=u(k[1], (3 * H, H)),          # torch layout, rows [r; z; n]
        w_hh=u(k[2], (3 * H, H)),
        b_ih=u(k[3], (3 * H,)),
        b_hh=u(k[4], (3 * H,)),
        w2=xavier_t(k[5], H, 1)[:, 0],     # (H,)
        b2=jnp.zeros((), dtype),
    )


def pack_params(p, compute_dtype=None):
    """Pack natural params into the 3 kernel operands: w1 (S+A,H), wg (2H,4H),
    vec (2,4H).  vec stays f32 (gate math precision); weights may be cast."""
    H = p["w_ih"].shape[1]
    cd = compute_dtype if compute_dtype is not None else p["w1"].dtype

    w1p = p["w1"].astype(cd)

    wih_t = p["w_ih"].T                      # (H, 3H) columns [r|z|n]
    whh_t = p["w_hh"].T
    zero = jnp.zeros((H, H), p["w1"].dtype)
    wg = jnp.concatenate(
        [
            jnp.concatenate([wih_t, zero], axis=1),                                # [Wir|Wiz|Win|0]
            jnp.concatenate([whh_t[:, :2 * H], zero, whh_t[:, 2 * H:]], axis=1),   # [Whr|Whz|0|Whn]
        ],
        axis=0,
    ).astype(cd)                             # (2H, 4H)

    bg = jnp.concatenate(
        [p["b_ih"][:2 * H] + p["b_hh"][:2 * H], p["b_ih"][2 * H:], p["b_hh"][2 * H:]]
    )                                        # (4H,)
    row1 = jnp.concatenate(
        [p["b1"], p["w2"], p["b2"][None], jnp.zeros((2 * H - 1,), p["b1"].dtype)]
    )                                        # (4H,) = [b1 | w2 | b2 | pad]
    vec = jnp.stack([bg, row1]).astype(jnp.float32)   # (2, 4H)
    return w1p, wg, vec


# ----------------------------------------------------------------------------
# Wrappers
# ----------------------------------------------------------------------------
def _pick_bm(B, block_b):
    # Single block while the call is launch/DMA-latency dominated.
    if B <= 512:
        return B
    # Otherwise: at least 2 batch blocks (v7x megacore), multiple of 8 rows,
    # capped at block_b.  Even at bm=4096 the double-buffered streamed operands
    # (~bm*(S+A+2H+1)*4B*2) stay far below v5e's 16 MiB scoped / v7x's 64 MiB
    # physical VMEM, so no explicit vmem_limit_bytes is needed by default.
    bm = min(block_b, (B + 1) // 2)
    bm = max(8, ((bm + 7) // 8) * 8)
    return min(bm, B)


def rnn_qnetwork_rollout(params, states, actions, h0=None, *, block_b=1024,
                         compute_dtype=None, vmem_limit_bytes=None,
                         interpret=False):
    """Fused rollout: states/actions are (T, B, S)/(T, B, A); returns
    (q_seq (T, B, 1), h_final (B, H)).  Semantically identical to calling the
    PyTorch module T times while threading h."""
    T, B, S = states.shape
    A = actions.shape[-1]
    H = params["w_ih"].shape[1]
    out_dtype = states.dtype

    if h0 is None:
        h0 = jnp.zeros((B, H), out_dtype)

    w1p, wg, vec = pack_params(params, compute_dtype)
    if compute_dtype is not None:
        states = states.astype(compute_dtype)
        actions = actions.astype(compute_dtype)
        h0 = h0.astype(compute_dtype)

    bm = _pick_bm(B, block_b)
    nb = pl.cdiv(B, bm)

    stream = lambda b, t: (t, b, 0)   # batch-block + timestep streamed operands
    per_b = lambda b, t: (b, 0)       # per-batch-block, constant over T
    const = lambda b, t: (0, 0)       # weights: VMEM-resident across the grid

    q, h_fin = pl.pallas_call(
        rnn_qnet_kernel,
        grid=(nb, T),
        in_specs=[
            pl.BlockSpec((None, bm, S), stream),       # states
            pl.BlockSpec((None, bm, A), stream),       # actions
            pl.BlockSpec((bm, H), per_b),              # h0
            pl.BlockSpec((S + A, H), const),           # packed l1 weight
            pl.BlockSpec((2 * H, 4 * H), const),       # packed GRU weight
            pl.BlockSpec((2, 4 * H), const),           # packed bias/vector slab
        ],
        out_specs=(
            pl.BlockSpec((None, bm, 1), stream),       # q per step
            pl.BlockSpec((bm, H), per_b),              # final hidden
        ),
        out_shape=(
            jax.ShapeDtypeStruct((T, B, 1), out_dtype),
            jax.ShapeDtypeStruct((B, H), out_dtype),
        ),
        scratch_shapes=[pltpu.VMEM((bm, H), jnp.float32)],   # hidden carry
        compiler_params=pltpu.CompilerParams(
            dimension_semantics=("parallel", "arbitrary"),
            vmem_limit_bytes=vmem_limit_bytes,
        ),
        interpret=interpret,
    )(states, actions, h0, w1p, wg, vec)
    return q, h_fin


def rnn_qnetwork_forward(params, states, actions, h=None, **kwargs):
    """Single step matching RNNQNetwork.forward(states, actions, h):
    states (B, S), actions (B, A), h (B, H) or None -> (q (B, 1), h_out (B, H))."""
    q, h_out = rnn_qnetwork_rollout(params, states[None], actions[None], h, **kwargs)
    return q[0], h_out


# ----------------------------------------------------------------------------
# Pure-JAX reference (canonical PyTorch GRUCell equations, unpacked params).
# ----------------------------------------------------------------------------
def reference_step(p, s, a, h):
    H = h.shape[-1]
    x = jnp.concatenate([s, a], axis=1)
    act = jax.nn.relu(x @ p["w1"] + p["b1"])
    gi = act @ p["w_ih"].T + p["b_ih"]
    gh = h @ p["w_hh"].T + p["b_hh"]
    r = jax.nn.sigmoid(gi[:, 0:H] + gh[:, 0:H])
    z = jax.nn.sigmoid(gi[:, H:2 * H] + gh[:, H:2 * H])
    n = jnp.tanh(gi[:, 2 * H:] + r * gh[:, 2 * H:])
    h_out = (1.0 - z) * n + z * h
    q = h_out @ p["w2"][:, None] + p["b2"]
    return q, h_out


def reference_rollout(p, states, actions, h0):
    h = h0
    qs = []
    for t in range(states.shape[0]):
        q, h = reference_step(p, states[t], actions[t], h)
        qs.append(q)
    return jnp.stack(qs, axis=0), h


if __name__ == "__main__":
    num_inputs, num_actions, hidden_dim = 20, 12, 32
    batch, seq = 8, 6

    key = jax.random.PRNGKey(0)
    k_par, k_s, k_a, k_h = jax.random.split(key, 4)

    params = init_params(k_par, num_inputs, num_actions, hidden_dim)
    states = jax.random.normal(k_s, (seq, batch, num_inputs), jnp.float32)
    actions = jax.random.normal(k_a, (seq, batch, num_actions), jnp.float32)
    h0 = jax.random.normal(k_h, (batch, hidden_dim), jnp.float32)

    # References.
    q_ref, h_ref = reference_rollout(params, states, actions, h0)
    q_ref0, h_ref0 = reference_step(
        params, states[0], actions[0], jnp.zeros((batch, hidden_dim), jnp.float32)
    )

    # Fused rollout kernel (explicit initial hidden).
    q_seq, h_fin = rnn_qnetwork_rollout(params, states, actions, h0)
    q_seq = jax.block_until_ready(q_seq)
    h_fin = jax.block_until_ready(h_fin)

    # Single-step path (h=None -> zeros), matching the PyTorch forward exactly.
    q1, h1 = rnn_qnetwork_forward(params, states[0], actions[0], None)
    jax.block_until_ready((q1, h1))

    assert q_seq.shape == (seq, batch, 1) and h_fin.shape == (batch, hidden_dim)
    assert jnp.allclose(q_seq, q_ref, rtol=1e-4, atol=1e-4)
    assert jnp.allclose(h_fin, h_ref, rtol=1e-4, atol=1e-4)
    assert q1.shape == (batch, 1) and h1.shape == (batch, hidden_dim)
    assert jnp.allclose(q1, q_ref0, rtol=1e-4, atol=1e-4)
    assert jnp.allclose(h1, h_ref0, rtol=1e-4, atol=1e-4)

    print("KERNEL_OK")
</pallas_src>

<mosaic_0001>
module attributes {stable_mosaic.version = 11 : i64} {
  func.func @rnn_qnet_kernel(%arg0: i32, %arg1: i32, %arg2: memref<1x8x20xf32, #tpu.memory_space<vmem>>, %arg3: memref<1x8x12xf32, #tpu.memory_space<vmem>>, %arg4: memref<8x32xf32, #tpu.memory_space<vmem>>, %arg5: memref<32x32xf32, #tpu.memory_space<vmem>>, %arg6: memref<64x128xf32, #tpu.memory_space<vmem>>, %arg7: memref<2x128xf32, #tpu.memory_space<vmem>>, %arg8: memref<1x8x1xf32, #tpu.memory_space<vmem>>, %arg9: memref<8x32xf32, #tpu.memory_space<vmem>>, %arg10: memref<8x32xf32, #tpu.memory_space<vmem>>) attributes {dimension_semantics = [#tpu.dimension_semantics<parallel>, #tpu.dimension_semantics<arbitrary>], iteration_bounds = array<i64: 1, 6>, scalar_prefetch = 0 : i64, scratch_operands = 1 : i64, tpu.core_type = #tpu.core_type<tc>, window_params = [{transform_indices = @transform_0, window_bounds = array<i64: 1, 8, 20>}, {transform_indices = @transform_1, window_bounds = array<i64: 1, 8, 12>}, {transform_indices = @transform_2, window_bounds = array<i64: 8, 32>}, {pipeline_mode = #tpu.pipeline_mode<synchronous>, transform_indices = @transform_3, window_bounds = array<i64: 32, 32>}, {pipeline_mode = #tpu.pipeline_mode<synchronous>, transform_indices = @transform_4, window_bounds = array<i64: 64, 128>}, {pipeline_mode = #tpu.pipeline_mode<synchronous>, transform_indices = @transform_5, window_bounds = array<i64: 2, 128>}, {transform_indices = @transform_6, window_bounds = array<i64: 1, 8, 1>}, {transform_indices = @transform_7, window_bounds = array<i64: 8, 32>}]} {
    %c0_i32 = arith.constant 0 : i32
    %0 = arith.cmpi eq, %arg1, %c0_i32 : i32
    %1 = arith.extui %0 : i1 to i32
    %c0_i32_0 = arith.constant 0 : i32
    %2 = arith.cmpi ne, %1, %c0_i32_0 : i32
    scf.if %2 {
      %c0_33 = arith.constant 0 : index
      %c0_34 = arith.constant 0 : index
      %55 = vector.load %arg4[%c0_33, %c0_34] : memref<8x32xf32, #tpu.memory_space<vmem>>, vector<8x32xf32>
      %c0_35 = arith.constant 0 : index
      %c0_36 = arith.constant 0 : index
      %56 = vector.load %arg10[%c0_35, %c0_36] : memref<8x32xf32, #tpu.memory_space<vmem>>, vector<8x32xf32>
      tpu.vector_store %arg10[%c0_35, %c0_36], %55 {strides = array<i32>} : memref<8x32xf32, #tpu.memory_space<vmem>>, vector<8x32xf32>,
    } else {
    }
    %c0 = arith.constant 0 : index
    %c0_1 = arith.constant 0 : index
    %3 = vector.load %arg10[%c0, %c0_1] : memref<8x32xf32, #tpu.memory_space<vmem>>, vector<8x32xf32>
    %c1 = arith.constant 1 : index
    %c0_2 = arith.constant 0 : index
    %4 = vector.load %arg7[%c1, %c0_2] : memref<2x128xf32, #tpu.memory_space<vmem>>, vector<1x32xf32>
    %c0_3 = arith.constant 0 : index
    %c0_4 = arith.constant 0 : index
    %c0_5 = arith.constant 0 : index
    %5 = vector.load %arg2[%c0_3, %c0_4, %c0_5] : memref<1x8x20xf32, #tpu.memory_space<vmem>>, vector<1x8x20xf32>
    %6 = vector.shape_cast %5 : vector<1x8x20xf32> to vector<8x20xf32>
    %c0_6 = arith.constant 0 : index
    %c0_7 = arith.constant 0 : index
    %7 = vector.load %arg5[%c0_6, %c0_7] : memref<32x32xf32, #tpu.memory_space<vmem>>, vector<20x32xf32>
    %cst = arith.constant dense<0.000000e+00> : vector<8x32xf32>
    %8 = tpu.matmul %6, %7, %cst {dimension_numbers = #tpu.dot_dimension_numbers<[1], [0], [0], [1], [0, 0, 1, 1], [], []>} : vector<8x20xf32>, vector<20x32xf32>, vector<8x32xf32> -> vector<8x32xf32>
    %c0_8 = arith.constant 0 : index
    %c0_9 = arith.constant 0 : index
    %c0_10 = arith.constant 0 : index
    %9 = vector.load %arg3[%c0_8, %c0_9, %c0_10] : memref<1x8x12xf32, #tpu.memory_space<vmem>>, vector<1x8x12xf32>
    %10 = vector.shape_cast %9 : vector<1x8x12xf32> to vector<8x12xf32>
    %c20 = arith.constant 20 : index
    %c0_11 = arith.constant 0 : index
    %11 = vector.load %arg5[%c20, %c0_11] : memref<32x32xf32, #tpu.memory_space<vmem>>, vector<12x32xf32>
    %cst_12 = arith.constant dense<0.000000e+00> : vector<8x32xf32>
    %12 = tpu.matmul %10, %11, %cst_12 {dimension_numbers = #tpu.dot_dimension_numbers<[1], [0], [0], [1], [0, 0, 1, 1], [], []>} : vector<8x12xf32>, vector<12x32xf32>, vector<8x32xf32> -> vector<8x32xf32>
    %13 = arith.addf %8, %12 : vector<8x32xf32>
    %14 = vector.broadcast %4 : vector<1x32xf32> to vector<8x32xf32>
    %15 = arith.addf %13, %14 : vector<8x32xf32>
    %cst_13 = arith.constant 0.000000e+00 : f32
    %16 = vector.broadcast %cst_13 : f32 to vector<8x32xf32>
    %17 = arith.maximumf %15, %16 : vector<8x32xf32>
    %c0_14 = arith.constant 0 : index
    %c0_15 = arith.constant 0 : index
    %18 = vector.load %arg7[%c0_14, %c0_15] : memref<2x128xf32, #tpu.memory_space<vmem>>, vector<1x128xf32>
    %c0_16 = arith.constant 0 : index
    %c0_17 = arith.constant 0 : index
    %19 = vector.load %arg6[%c0_16, %c0_17] : memref<64x128xf32, #tpu.memory_space<vmem>>, vector<32x128xf32>
    %cst_18 = arith.constant dense<0.000000e+00> : vector<8x128xf32>
    %20 = tpu.matmul %17, %19, %cst_18 {dimension_numbers = #tpu.dot_dimension_numbers<[1], [0], [0], [1], [0, 0, 1, 1], [], []>} : vector<8x32xf32>, vector<32x128xf32>, vector<8x128xf32> -> vector<8x128xf32>
    %c32 = arith.constant 32 : index
    %c0_19 = arith.constant 0 : index
    %21 = vector.load %arg6[%c32, %c0_19] : memref<64x128xf32, #tpu.memory_space<vmem>>, vector<32x128xf32>
    %cst_20 = arith.constant dense<0.000000e+00> : vector<8x128xf32>
    %22 = tpu.matmul %3, %21, %cst_20 {dimension_numbers = #tpu.dot_dimension_numbers<[1], [0], [0], [1], [0, 0, 1, 1], [], []>} : vector<8x32xf32>, vector<32x128xf32>, vector<8x128xf32> -> vector<8x128xf32>
    %23 = arith.addf %20, %22 : vector<8x128xf32>
    %24 = vector.broadcast %18 : vector<1x128xf32> to vector<8x128xf32>
    %25 = arith.addf %23, %24 : vector<8x128xf32>
    %26 = vector.extract_strided_slice %25 {offsets = [0, 0], sizes = [8, 64], strides = [1, 1]} : vector<8x128xf32> to vector<8x64xf32>
    %27 = arith.negf %26 : vector<8x64xf32>
    %28 = math.exp %27 : vector<8x64xf32>
    %cst_21 = arith.constant 1.000000e+00 : f32
    %29 = vector.broadcast %cst_21 : f32 to vector<8x64xf32>
    %30 = arith.addf %29, %28 : vector<8x64xf32>
    %31 = arith.divf %29, %30 : vector<8x64xf32>
    %32 = vector.extract_strided_slice %31 {offsets = [0, 0], sizes = [8, 32], strides = [1, 1]} : vector<8x64xf32> to vector<8x32xf32>
    %33 = vector.extract_strided_slice %31 {offsets = [0, 32], sizes = [8, 32], strides = [1, 1]} : vector<8x64xf32> to vector<8x32xf32>
    %34 = vector.extract_strided_slice %25 {offsets = [0, 64], sizes = [8, 32], strides = [1, 1]} : vector<8x128xf32> to vector<8x32xf32>
    %35 = vector.extract_strided_slice %25 {offsets = [0, 96], sizes = [8, 32], strides = [1, 1]} : vector<8x128xf32> to vector<8x32xf32>
    %36 = arith.mulf %32, %35 : vector<8x32xf32>
    %37 = arith.addf %34, %36 : vector<8x32xf32>
    %38 = math.tanh %37 : vector<8x32xf32>
    %39 = arith.subf %3, %38 : vector<8x32xf32>
    %40 = arith.mulf %33, %39 : vector<8x32xf32>
    %41 = arith.addf %38, %40 : vector<8x32xf32>
    %c0_22 = arith.constant 0 : index
    %c0_23 = arith.constant 0 : index
    %42 = vector.load %arg10[%c0_22, %c0_23] : memref<8x32xf32, #tpu.memory_space<vmem>>, vector<8x32xf32>
    tpu.vector_store %arg10[%c0_22, %c0_23], %41 {strides = array<i32>} : memref<8x32xf32, #tpu.memory_space<vmem>>, vector<8x32xf32>,
    %c1_24 = arith.constant 1 : index
    %c32_25 = arith.constant 32 : index
    %43 = vector.load %arg7[%c1_24, %c32_25] : memref<2x128xf32, #tpu.memory_space<vmem>>, vector<1x32xf32>
    %c1_26 = arith.constant 1 : index
    %c64 = arith.constant 64 : index
    %44 = vector.load %arg7[%c1_26, %c64] : memref<2x128xf32, #tpu.memory_space<vmem>>, vector<1x1xf32>
    %45 = vector.broadcast %43 : vector<1x32xf32> to vector<8x32xf32>
    %46 = arith.mulf %41, %45 : vector<8x32xf32>
    %cst_27 = arith.constant dense<0.000000e+00> : vector<8xf32>
    %47 = vector.multi_reduction <add>, %46, %cst_27 [1] : vector<8x32xf32> to vector<8xf32>
    %48 = vector.shape_cast %47 : vector<8xf32> to vector<8x1xf32>
    %49 = vector.broadcast %44 : vector<1x1xf32> to vector<8x1xf32>
    %50 = arith.addf %48, %49 : vector<8x1xf32>
    %c0_28 = arith.constant 0 : index
    %c0_29 = arith.constant 0 : index
    %c0_30 = arith.constant 0 : index
    %51 = vector.load %arg8[%c0_28, %c0_29, %c0_30] : memref<1x8x1xf32, #tpu.memory_space<vmem>>, vector<1x8x1xf32>
    %52 = vector.shape_cast %51 : vector<1x8x1xf32> to vector<8x1xf32>
    %53 = vector.shape_cast %50 : vector<8x1xf32> to vector<1x8x1xf32>
    tpu.vector_store %arg8[%c0_28, %c0_29, %c0_30], %53 {strides = array<i32>} : memref<1x8x1xf32, #tpu.memory_space<vmem>>, vector<1x8x1xf32>,
    %c0_31 = arith.constant 0 : index
    %c0_32 = arith.constant 0 : index
    %54 = vector.load %arg9[%c0_31, %c0_32] : memref<8x32xf32, #tpu.memory_space<vmem>>, vector<8x32xf32>
    tpu.vector_store %arg9[%c0_31, %c0_32], %41 {strides = array<i32>} : memref<8x32xf32, #tpu.memory_space<vmem>>, vector<8x32xf32>,
    return
  }
  func.func @transform_0(%arg0: i32, %arg1: i32) -> (i32, i32, i32) {
    %c0_i32 = arith.constant 0 : i32
    %c0_i32_0 = arith.constant 0 : i32
    return %arg1, %arg0, %c0_i32 : i32, i32, i32
  }
  func.func @transform_1(%arg0: i32, %arg1: i32) -> (i32, i32, i32) {
    %c0_i32 = arith.constant 0 : i32
    %c0_i32_0 = arith.constant 0 : i32
    return %arg1, %arg0, %c0_i32 : i32, i32, i32
  }
  func.func @transform_2(%arg0: i32, %arg1: i32) -> (i32, i32) {
    %c0_i32 = arith.constant 0 : i32
    %c0_i32_0 = arith.constant 0 : i32
    return %arg0, %c0_i32 : i32, i32
  }
  func.func @transform_3(%arg0: i32, %arg1: i32) -> (i32, i32) {
    %c0_i32 = arith.constant 0 : i32
    %c0_i32_0 = arith.constant 0 : i32
    %c0_i32_1 = arith.constant 0 : i32
    return %c0_i32, %c0_i32_0 : i32, i32
  }
  func.func @transform_4(%arg0: i32, %arg1: i32) -> (i32, i32) {
    %c0_i32 = arith.constant 0 : i32
    %c0_i32_0 = arith.constant 0 : i32
    %c0_i32_1 = arith.constant 0 : i32
    return %c0_i32, %c0_i32_0 : i32, i32
  }
  func.func @transform_5(%arg0: i32, %arg1: i32) -> (i32, i32) {
    %c0_i32 = arith.constant 0 : i32
    %c0_i32_0 = arith.constant 0 : i32
    %c0_i32_1 = arith.constant 0 : i32
    return %c0_i32, %c0_i32_0 : i32, i32
  }
  func.func @transform_6(%arg0: i32, %arg1: i32) -> (i32, i32, i32) {
    %c0_i32 = arith.constant 0 : i32
    %c0_i32_0 = arith.constant 0 : i32
    return %arg1, %arg0, %c0_i32 : i32, i32, i32
  }
  func.func @transform_7(%arg0: i32, %arg1: i32) -> (i32, i32) {
    %c0_i32 = arith.constant 0 : i32
    %c0_i32_0 = arith.constant 0 : i32
    return %arg0, %c0_i32 : i32, i32
  }
}

</mosaic_0001>

<llo_original>
// kernel: tpu_custom_call.1
$region0: #{tpu_custom_call.1}
  #allocation0 [shape = 'u32[]', space=smem, size = 0x4, offset = 0x4, fixed_abs, tag = 'smem constant byte address 0x4 - core index']
  #allocation1 [shape = 'u32[144,128]{1,0:T(1,128)}', space=vmem, size = 0x12000, scoped, tag = 'internal scratch']
  #allocation2 [shape = 'f32[8,32]{1,0:T(8,128)}', space=vmem, size = 0x1000, scoped, tag = 'scratch operand']
  %s0 = inlined_call_operand.hbm [shape: f32[6,8,20], index: 0, kind: input, shape index: {}]
  %s1 = inlined_call_operand.hbm [shape: f32[6,8,12], index: 1, kind: input, shape index: {}]
  %s2 = inlined_call_operand.hbm [shape: f32[8,32], index: 2, kind: input, shape index: {}]
  %s3 = inlined_call_operand.hbm [shape: f32[32,32], index: 3, kind: input, shape index: {}]
  %s4 = inlined_call_operand.hbm [shape: f32[64,128], index: 4, kind: input, shape index: {}]
  %s5 = inlined_call_operand.vmem [shape: f32[2,128], index: 5, kind: input, shape index: {}]
  %s6 = inlined_call_operand.vmem [shape: f32[6,8,1], index: 6, kind: output, shape index: {0}]
  %s7 = inlined_call_operand.hbm [shape: f32[8,32], index: 7, kind: output, shape index: {1}]
  %8 = xla_tuple %s6, %s7
  %s9 = sld [smem:[#allocation0]]
  $region89: #{tpu_custom_call.1} parent=0
    _
  %s11 = ssub.s32 1, %s9
  %s12 = scalar_select 0, %s11, %s9
  $region1: #{tpu_custom_call.1} parent=0
    #allocation3 [shape = 'u8[8192]{0}', space=vmem, size = 0x2000, scoped, tag = 'input window, operand 0']
    #allocation4 [shape = 's32[2]{0}', space=sflag, size = 0x8, scoped, tag = 'scoped memory for tpu_custom_call.1']
    #allocation5 [shape = 's32[2]{0}', space=sflag, size = 0x8, scoped, tag = 'scoped memory for tpu_custom_call.1']
    #allocation6 [shape = 'u8[8192]{0}', space=vmem, size = 0x2000, scoped, tag = 'input window, operand 1']
    #allocation7 [shape = 's32[2]{0}', space=sflag, size = 0x8, scoped, tag = 'scoped memory for tpu_custom_call.1']
    #allocation8 [shape = 'u8[4096]{0}', space=vmem, size = 0x1000, scoped, tag = 'input window, operand 2, single buffered']
    #allocation9 [shape = 'u8[16384]{0}', space=vmem, size = 0x4000, scoped, tag = 'input window, operand 3, single buffered']
    #allocation10 [shape = 's32[1]{0}', space=sflag, size = 0x4, scoped, tag = 'scoped memory for tpu_custom_call.1']
    #allocation11 [shape = 'u8[32768]{0}', space=vmem, size = 0x8000, scoped, tag = 'input window, operand 4, single buffered']
    #allocation12 [shape = 'u8[4096]{0}', space=vmem, size = 0x1000, scoped, tag = 'output window, operand 1, single buffered']
    %13 = vsyncpa [#allocation4], 0
    %s14 = scalar_lea.sflag [#allocation4], 1
    %15 = vsyncpa %s14, 0
    %16 = vsyncpa [#allocation7], 0
    %s17 = scalar_lea.sflag [#allocation7], 1
    %18 = vsyncpa %s17, 0
    %19 = vsyncpa [#allocation10], 0
    %20 = vsyncpa [#allocation5], 0
    loop: start=0, step=1, limit=8
    $region2: #{tpu_custom_call.1} parent=1 // loop_pre_header
      _
    $region3: #{tpu_custom_call.1} parent=1 // loop_header
      %s22 = sphi 0, %s26
      %p23 = scmp.ge.s32.totalorder %s22, 8
      %s29 = sphi 0, %s41
      %s30 = sphi 0, %s37
      %s31 = sphi 0, %s29
      %s32 = sphi 0, %s30
      %s33 = sphi 0, %s31
      %s34 = sphi 0, %s32
      %s46 = sphi 0, %s48
      %s49 = sphi 0, %s46
      %s50 = sphi 0, %s49
      %s66 = sphi 0, %s50
      %s74 = sphi 0, %s76
      %s77 = sphi 0, %s74
      %s78 = sphi 0, %s77
      %s94 = sphi 0, %s78
      %s100 = sphi 0, %s102
      %s103 = sphi 0, %s100
      %s104 = sphi 0, %s103
      %s120 = sphi 0, %s104
      %s124 = sphi 0, %s124
      %s126 = sphi 0, %s124
      %s127 = sphi 0, %s126
      %s141 = sphi 0, %s127
      %s145 = sphi 0, %s145
      %s147 = sphi 0, %s145
      %s148 = sphi 0, %s147
      %s162 = sphi 0, %s148
      %s166 = sphi 0, %s166
      %s168 = sphi 0, %s166
      %s169 = sphi 0, %s168
      %s183 = sphi 0, %s169
      %s191 = sphi 0, %s193
      %s194 = sphi 0, %s191
      %s195 = sphi 0, %s194
      %s211 = sphi 0, %s195
      %s217 = sphi 0, %s219
      %s220 = sphi 0, %s217
      %s221 = sphi 0, %s220
      %s237 = sphi 0, %s221
    $region4: #{tpu_custom_call.1} parent=1 // loop_header_branch
      %25 = sbr.rel (%p23) target = $region8
    $region5: #{tpu_custom_call.1} parent=1 // loop_body
      %s27 = ssub.s32 %s22, 1
      %s28 = ssub.s32 %s22, 2
      %s35 = sadd.s32 1, %s30
      %p36 = scmp.ge.s32.totalorder %s35, 6
      %s37 = scalar_select %p36, 0, %s35
      %s38 = sadd.s32 1, %s29
      %s39 = scalar_select %p36, %s38, %s29
      %p40 = scmp.ge.s32.totalorder %s39, 1
      %s41 = scalar_select %p40, 0, %s39
      %s42 = ssub.s32 %s30, %s37
      %s43 = ssub.s32 %s29, %s41
      %s44 = sor.u32 %s42, %s43
      %p45 = scmp.eq.s32.totalorder %s44, 0
      %s47 = sadd.s32 %s46, 1
      %s48 = scalar_select %p45, %s46, %s47
      %p51 = pneg %p45
      %p52 = scmp.eq.s32.totalorder %s22, 5
      %p53 = por %p51, %p52
      %p54 = scmp.ne.s32.totalorder %s46, %s49
      %p55 = scmp.eq.s32.totalorder %s22, 0
      %p56 = por %p54, %p55
      %p57 = scmp.ne.s32.totalorder %s46, %s49
      %p58 = scmp.eq.s32.totalorder %s27, 5
      %p59 = por %p57, %p58
      %p60 = scmp.ne.s32.totalorder %s49, %s50
      %p61 = scmp.eq.s32.totalorder %s27, 0
      %p62 = por %p60, %p61
      %p63 = scmp.ne.s32.totalorder %s49, %s50
      %p64 = scmp.eq.s32.totalorder %s28, 5
      %p65 = por %p63, %p64
      %p67 = scmp.ne.s32.totalorder %s50, %s66
      %p68 = scmp.eq.s32.totalorder %s28, 0
      %p69 = por %p67, %p68
      %s70 = ssub.s32 %s30, %s37
      %s71 = ssub.s32 %s29, %s41
      %s72 = sor.u32 %s70, %s71
      %p73 = scmp.eq.s32.totalorder %s72, 0
      %s75 = sadd.s32 %s74, 1
      %s76 = scalar_select %p73, %s74, %s75
      %p79 = pneg %p73
      %p80 = scmp.eq.s32.totalorder %s22, 5
      %p81 = por %p79, %p80
      %p82 = scmp.ne.s32.totalorder %s74, %s77
      %p83 = scmp.eq.s32.totalorder %s22, 0
      %p84 = por %p82, %p83
      %p85 = scmp.ne.s32.totalorder %s74, %s77
      %p86 = scmp.eq.s32.totalorder %s27, 5
      %p87 = por %p85, %p86
      %p88 = scmp.ne.s32.totalorder %s77, %s78
      %p89 = scmp.eq.s32.totalorder %s27, 0
      %p90 = por %p88, %p89
      %p91 = scmp.ne.s32.totalorder %s77, %s78
      %p92 = scmp.eq.s32.totalorder %s28, 5
      %p93 = por %p91, %p92
      %p95 = scmp.ne.s32.totalorder %s78, %s94
      %p96 = scmp.eq.s32.totalorder %s28, 0
      %p97 = por %p95, %p96
      %s98 = ssub.s32 %s29, %s41
      %p99 = scmp.eq.s32.totalorder %s98, 0
      %s101 = sadd.s32 %s100, 1
      %s102 = scalar_select %p99, %s100, %s101
      %p105 = pneg %p99
      %p106 = scmp.eq.s32.totalorder %s22, 5
      %p107 = por %p105, %p106
      %p108 = scmp.ne.s32.totalorder %s100, %s103
      %p109 = scmp.eq.s32.totalorder %s22, 0
      %p110 = por %p108, %p109
      %p111 = scmp.ne.s32.totalorder %s100, %s103
      %p112 = scmp.eq.s32.totalorder %s27, 5
      %p113 = por %p111, %p112
      %p114 = scmp.ne.s32.totalorder %s103, %s104
      %p115 = scmp.eq.s32.totalorder %s27, 0
      %p116 = por %p114, %p115
      %p117 = scmp.ne.s32.totalorder %s103, %s104
      %p118 = scmp.eq.s32.totalorder %s28, 5
      %p119 = por %p117, %p118
      %p121 = scmp.ne.s32.totalorder %s104, %s120
      %p122 = scmp.eq.s32.totalorder %s28, 0
      %p123 = por %p121, %p122
      %s125 = sadd.s32 %s124, 1
      %p128 = scmp.eq.s32.totalorder %s22, 5
      %p129 = scmp.ne.s32.totalorder %s124, %s126
      %p130 = scmp.eq.s32.totalorder %s22, 0
      %p131 = por %p129, %p130
      %p132 = scmp.ne.s32.totalorder %s124, %s126
      %p133 = scmp.eq.s32.totalorder %s27, 5
      %p134 = por %p132, %p133
      %p135 = scmp.ne.s32.totalorder %s126, %s127
      %p136 = scmp.eq.s32.totalorder %s27, 0
      %p137 = por %p135, %p136
      %p138 = scmp.ne.s32.totalorder %s126, %s127
      %p139 = scmp.eq.s32.totalorder %s28, 5
      %p140 = por %p138, %p139
      %p142 = scmp.ne.s32.totalorder %s127, %s141
      %p143 = scmp.eq.s32.totalorder %s28, 0
      %p144 = por %p142, %p143
      %s146 = sadd.s32 %s145, 1
      %p149 = scmp.eq.s32.totalorder %s22, 5
      %p150 = scmp.ne.s32.totalorder %s145, %s147
      %p151 = scmp.eq.s32.totalorder %s22, 0
      %p152 = por %p150, %p151
      %p153 = scmp.ne.s32.totalorder %s145, %s147
      %p154 = scmp.eq.s32.totalorder %s27, 5
      %p155 = por %p153, %p154
      %p156 = scmp.ne.s32.totalorder %s147, %s148
      %p157 = scmp.eq.s32.totalorder %s27, 0
      %p158 = por %p156, %p157
      %p159 = scmp.ne.s32.totalorder %s147, %s148
      %p160 = scmp.eq.s32.totalorder %s28, 5
      %p161 = por %p159, %p160
      %p163 = scmp.ne.s32.totalorder %s148, %s162
      %p164 = scmp.eq.s32.totalorder %s28, 0
      %p165 = por %p163, %p164
      %s167 = sadd.s32 %s166, 1
      %p170 = scmp.eq.s32.totalorder %s22, 5
      %p171 = scmp.ne.s32.totalorder %s166, %s168
      %p172 = scmp.eq.s32.totalorder %s22, 0
      %p173 = por %p171, %p172
      %p174 = scmp.ne.s32.totalorder %s166, %s168
      %p175 = scmp.eq.s32.totalorder %s27, 5
      %p176 = por %p174, %p175
      %p177 = scmp.ne.s32.totalorder %s168, %s169
      %p178 = scmp.eq.s32.totalorder %s27, 0
      %p179 = por %p177, %p178
      %p180 = scmp.ne.s32.totalorder %s168, %s169
      %p181 = scmp.eq.s32.totalorder %s28, 5
      %p182 = por %p180, %p181
      %p184 = scmp.ne.s32.totalorder %s169, %s183
      %p185 = scmp.eq.s32.totalorder %s28, 0
      %p186 = por %p184, %p185
      %s187 = ssub.s32 %s30, %s37
      %s188 = ssub.s32 %s29, %s41
      %s189 = sor.u32 %s187, %s188
      %p190 = scmp.eq.s32.totalorder %s189, 0
      %s192 = sadd.s32 %s191, 1
      %s193 = scalar_select %p190, %s191, %s192
      %p196 = pneg %p190
      %p197 = scmp.eq.s32.totalorder %s22, 5
      %p198 = por %p196, %p197
      %p199 = scmp.ne.s32.totalorder %s191, %s194
      %p200 = scmp.eq.s32.totalorder %s22, 0
      %p201 = por %p199, %p200
      %p202 = scmp.ne.s32.totalorder %s191, %s194
      %p203 = scmp.eq.s32.totalorder %s27, 5
      %p204 = por %p202, %p203
      %p205 = scmp.ne.s32.totalorder %s194, %s195
      %p206 = scmp.eq.s32.totalorder %s27, 0
      %p207 = por %p205, %p206
      %p208 = scmp.ne.s32.totalorder %s194, %s195
      %p209 = scmp.eq.s32.totalorder %s28, 5
      %p210 = por %p208, %p209
      %p212 = scmp.ne.s32.totalorder %s195, %s211
      %p213 = scmp.eq.s32.totalorder %s28, 0
      %p214 = por %p212, %p213
      %s215 = ssub.s32 %s29, %s41
      %p216 = scmp.eq.s32.totalorder %s215, 0
      %s218 = sadd.s32 %s217, 1
      %s219 = scalar_select %p216, %s217, %s218
      %p222 = pneg %p216
      %p223 = scmp.eq.s32.totalorder %s22, 5
      %p224 = por %p222, %p223
      %p225 = scmp.ne.s32.totalorder %s217, %s220
      %p226 = scmp.eq.s32.totalorder %s22, 0
      %p227 = por %p225, %p226
      %p228 = scmp.ne.s32.totalorder %s217, %s220
      %p229 = scmp.eq.s32.totalorder %s27, 5
      %p230 = por %p228, %p229
      %p231 = scmp.ne.s32.totalorder %s220, %s221
      %p232 = scmp.eq.s32.totalorder %s27, 0
      %p233 = por %p231, %p232
      %p234 = scmp.ne.s32.totalorder %s220, %s221
      %p235 = scmp.eq.s32.totalorder %s28, 5
      %p236 = por %p234, %p235
      %p238 = scmp.ne.s32.totalorder %s221, %s237
      %p239 = scmp.eq.s32.totalorder %s28, 0
      %p240 = por %p238, %p239
      %p241 = scmp.le.s32.totalorder 1, %s22
      %p242 = scmp.lt.s32.totalorder %s22, 7
      %p243 = pnand %p241, %p242
      %p244 = pneg %p243
      // Predicated region
      $region9: #{tpu_custom_call.1} parent=5 // pred_check
        _
      $region10: #{tpu_custom_call.1} parent=5 // pred_check_branch
        %246 = sbr.rel (%p243) target = $region12
      $region11: #{tpu_custom_call.1} parent=5 // pred_region
        %s247 = ssub.s32 %s22, 1
        // Predicated region
        $region13: #{tpu_custom_call.1} parent=11 // pred_check
          %p248 = pneg %p116
        $region14: #{tpu_custom_call.1} parent=11 // pred_check_branch
          %250 = sbr.rel (%p248) target = $region16
        $region15: #{tpu_custom_call.1} parent=11 // pred_region
          %s252 = ssub.s32 128, 128
          %253 = vsyncadd [#allocation7], %s252
          %s254 = smul.addr %s31, 128
          %s255 = scalar_lea.hbm %s2, %s254
          %s257 = sshll.u32 [#allocation8], 4
          %s258 = int_to_ptr.vmem [resolvable:$true] %s257
          %260 = dma.hbm_to_vmem [thread:$0]  %s255, 128, %s258, [#allocation7]
        $region16: #{tpu_custom_call.1} parent=11 // pred_fallthru
          _
        // Predicated region
        $region17: #{tpu_custom_call.1} parent=11 // pred_check
          %p261 = pneg %p137
        $region18: #{tpu_custom_call.1} parent=11 // pred_check_branch
          %263 = sbr.rel (%p261) target = $region20
        $region19: #{tpu_custom_call.1} parent=11 // pred_region
          %s265 = ssub.s32 512, 512
          %266 = vsyncadd [#allocation10], %s265
          %s267 = sshll.u32 [#allocation9], 4
          %s268 = int_to_ptr.vmem [resolvable:$true] %s267
          %273 = dma.hbm_to_vmem [thread:$0]  %s3, 512, %s268, [#allocation10], 128, 128, 8
        $region20: #{tpu_custom_call.1} parent=11 // pred_fallthru
          _
        // Predicated region
        $region21: #{tpu_custom_call.1} parent=11 // pred_check
          %p274 = pneg %p158
        $region22: #{tpu_custom_call.1} parent=11 // pred_check_branch
          %276 = sbr.rel (%p274) target = $region24
        $region23: #{tpu_custom_call.1} parent=11 // pred_region
          %s278 = ssub.s32 1024, 1024
          %279 = vsyncadd [#allocation10], %s278
          %s280 = sshll.u32 [#allocation11], 4
          %s281 = int_to_ptr.vmem [resolvable:$true] %s280
          %286 = dma.hbm_to_vmem [thread:$0]  %s4, 1024, %s281, [#allocation10], 128, 128, 8
        $region24: #{tpu_custom_call.1} parent=11 // pred_fallthru
          _
        // Predicated region
        $region25: #{tpu_custom_call.1} parent=11 // pred_check
          %p287 = pneg %p179
        $region26: #{tpu_custom_call.1} parent=11 // pred_check_branch
          %289 = sbr.rel (%p287) target = $region28
        $region27: #{tpu_custom_call.1} parent=11 // pred_region
          _
        $region28: #{tpu_custom_call.1} parent=11 // pred_fallthru
          _
      $region12: #{tpu_custom_call.1} parent=5 // pred_fallthru
        _
      %p290 = scmp.lt.s32.totalorder %s22, 6
      // Predicated region
      $region29: #{tpu_custom_call.1} parent=5 // pred_check
        %p291 = pneg %p290
      $region30: #{tpu_custom_call.1} parent=5 // pred_check_branch
        %293 = sbr.rel (%p291) target = $region32
      $region31: #{tpu_custom_call.1} parent=5 // pred_region
        // Predicated region
        $region33: #{tpu_custom_call.1} parent=31 // pred_check
          %p294 = pneg %p56
        $region34: #{tpu_custom_call.1} parent=31 // pred_check_branch
          %296 = sbr.rel (%p294) target = $region36
        $region35: #{tpu_custom_call.1} parent=31 // pred_region
          %s297 = sand.u32 %s46, 1
          %s298 = scalar_lea.sflag [#allocation4], %s297
          %s299 = sand.u32 %s46, 1
          %s300 = smul.addr %s299, 8
          %s301 = scalar_lea.vmem [#allocation3], %s300
          %s303 = ssub.s32 128, 128
          %304 = vsyncadd %s298, %s303
          %s305 = sadd.s32 %s29, %s30
          %s306 = smul.addr %s305, 128
          %s307 = scalar_lea.hbm %s0, %s306
          %s309 = sshll.u32 %s301, 4
          %s310 = int_to_ptr.vmem [resolvable:$true] %s309
          %312 = dma.hbm_to_vmem [thread:$0]  %s307, 128, %s310, %s298
        $region36: #{tpu_custom_call.1} parent=31 // pred_fallthru
          _
        // Predicated region
        $region37: #{tpu_custom_call.1} parent=31 // pred_check
          %p313 = pneg %p84
        $region38: #{tpu_custom_call.1} parent=31 // pred_check_branch
          %315 = sbr.rel (%p313) target = $region40
        $region39: #{tpu_custom_call.1} parent=31 // pred_region
          %s316 = sand.u32 %s22, 1
          %s317 = scalar_lea.sflag [#allocation7], %s316
          %s318 = sand.u32 %s74, 1
          %s319 = smul.addr %s318, 8
          %s320 = scalar_lea.vmem [#allocation6], %s319
          %s322 = ssub.s32 128, 128
          %323 = vsyncadd %s317, %s322
          %s324 = sadd.s32 %s29, %s30
          %s325 = smul.addr %s324, 128
          %s326 = scalar_lea.hbm %s1, %s325
          %s328 = sshll.u32 %s320, 4
          %s329 = int_to_ptr.vmem [resolvable:$true] %s328
          %331 = dma.hbm_to_vmem [thread:$0]  %s326, 128, %s329, %s317
        $region40: #{tpu_custom_call.1} parent=31 // pred_fallthru
          _
      $region32: #{tpu_custom_call.1} parent=5 // pred_fallthru
        _
      %p332 = scmp.le.s32.totalorder 1, %s22
      %p333 = scmp.lt.s32.totalorder %s22, 7
      %p334 = pnand %p332, %p333
      %p335 = pneg %p334
      // Predicated region
      $region41: #{tpu_custom_call.1} parent=5 // pred_check
        _
      $region42: #{tpu_custom_call.1} parent=5 // pred_check_branch
        %337 = sbr.rel (%p334) target = $region44
      $region43: #{tpu_custom_call.1} parent=5 // pred_region
        %s338 = ssub.s32 %s22, 1
        %s339 = sand.u32 %s49, 1
        %s340 = scalar_lea.sflag [#allocation4], %s339
        %s341 = sand.u32 %s49, 1
        %s342 = smul.addr %s341, 8
        %s343 = scalar_lea.vmem [#allocation3], %s342
        // Predicated region
        $region45: #{tpu_custom_call.1} parent=43 // pred_check
          %p344 = pneg %p62
        $region46: #{tpu_custom_call.1} parent=43 // pred_check_branch
          %346 = sbr.rel (%p344) target = $region48
        $region47: #{tpu_custom_call.1} parent=43 // pred_region
          %347 = dma.done %s340, 128
        $region48: #{tpu_custom_call.1} parent=43 // pred_fallthru
          _
        %s348 = sand.u32 %s27, 1
        %s349 = scalar_lea.sflag [#allocation7], %s348
        %s350 = sand.u32 %s77, 1
        %s351 = smul.addr %s350, 8
        %s352 = scalar_lea.vmem [#allocation6], %s351
        // Predicated region
        $region49: #{tpu_custom_call.1} parent=43 // pred_check
          %p353 = pneg %p90
        $region50: #{tpu_custom_call.1} parent=43 // pred_check_branch
          %355 = sbr.rel (%p353) target = $region52
        $region51: #{tpu_custom_call.1} parent=43 // pred_region
          %356 = dma.done %s349, 128
        $region52: #{tpu_custom_call.1} parent=43 // pred_fallthru
          _
        // Predicated region
        $region53: #{tpu_custom_call.1} parent=43 // pred_check
          %p357 = pneg %p116
        $region54: #{tpu_custom_call.1} parent=43 // pred_check_branch
          %359 = sbr.rel (%p357) target = $region56
        $region55: #{tpu_custom_call.1} parent=43 // pred_region
          %360 = dma.done [#allocation7], 128
        $region56: #{tpu_custom_call.1} parent=43 // pred_fallthru
          _
        // Predicated region
        $region57: #{tpu_custom_call.1} parent=43 // pred_check
          %p361 = pneg %p137
        $region58: #{tpu_custom_call.1} parent=43 // pred_check_branch
          %363 = sbr.rel (%p361) target = $region60
        $region59: #{tpu_custom_call.1} parent=43 // pred_region
          %364 = dma.done [#allocation10], 512
        $region60: #{tpu_custom_call.1} parent=43 // pred_fallthru
          _
        // Predicated region
        $region61: #{tpu_custom_call.1} parent=43 // pred_check
          %p365 = pneg %p158
        $region62: #{tpu_custom_call.1} parent=43 // pred_check_branch
          %367 = sbr.rel (%p365) target = $region64
        $region63: #{tpu_custom_call.1} parent=43 // pred_region
          %368 = dma.done [#allocation10], 1024
        $region64: #{tpu_custom_call.1} parent=43 // pred_fallthru
          _
        %s369 = sand.u32 %s49, 1
        %s370 = scalar_lea.sflag [#allocation4], %s369
        %s371 = sand.u32 %s49, 1
        %s372 = smul.addr %s371, 8
        %s373 = scalar_lea.vmem [#allocation3], %s372
        %p374 = pneg %p62
        %p375 = pneg %p59
        %s376 = sand.u32 %s27, 1
        %s377 = scalar_lea.sflag [#allocation7], %s376
        %s378 = sand.u32 %s77, 1
        %s379 = smul.addr %s378, 8
        %s380 = scalar_lea.vmem [#allocation6], %s379
        %p381 = pneg %p90
        %p382 = pneg %p87
        %p383 = pneg %p116
        %p384 = pneg %p113
        %p385 = pneg %p137
        %p386 = pneg %p134
        %p387 = pneg %p158
        %p388 = pneg %p155
        %p389 = pneg %p179
        %p390 = pneg %p176
        %p391 = pneg %p207
        %p392 = pneg %p204
        %p393 = scmp.lt.s32.totalorder %s32, 5
        %s394 = scalar_select %p393, %s32, 5
        %p395 = scmp.lt.s32.totalorder %s31, 0
        %s396 = scalar_select %p395, %s31, 0
        %s397 = sadd.s32 %s396, %s394
        %s398 = smul.addr %s397, 8
        %s399 = scalar_lea.vmem %s6, %s398
        %p400 = pneg %p233
        %p401 = pneg %p230
        %p402 = scmp.lt.s32.totalorder %s32, 5
        %s403 = scalar_select %p402, %s32, 5
        %p404 = scmp.lt.s32.totalorder %s31, 0
        %s405 = scalar_select %p404, %s31, 0
        %s406 = sadd.s32 %s405, %s403
        %s407 = smul.addr %s406, 8
        %s408 = scalar_lea.vmem %s6, %s407
        %p409 = scmp.eq.s32.totalorder %s32, 0
        // Predicated region
        $region65: #{tpu_custom_call.1} parent=43 // pred_check
          %p410 = pneg %p409
        $region66: #{tpu_custom_call.1} parent=43 // pred_check_branch
          %412 = sbr.rel (%p410) target = $region68
        $region67: #{tpu_custom_call.1} parent=43 // pred_region
          %v413 = vld [vmem:[#allocation8] sm:$0xff]
          %vm414 = vcmask 261120
          %415 = vst.msk [vmem:[#allocation2] sm:$0xff] %vm414, %v413
        $region68: #{tpu_custom_call.1} parent=43 // pred_fallthru
          _
        %v416 = vld [vmem:[#allocation2] sm:$0xff]
        %v417 = vld [vmem:[%s5 + $0x1] sm:$0x1]
        %v418 = vld [vmem:[%s343] sm:$0xff]
        %v419 = vld [vmem:[#allocation9] sm:$0xff]
        %v420 = vld [vmem:[#allocation9 + $0x8] sm:$0xff]
        %v421 = vld [vmem:[#allocation9 + $0x10] sm:$0xf]
        %v422 = vld [vmem:[%s352] sm:$0xff]
        %v423 = vld [vmem:[#allocation9 + $0x14] sm:$0xff]
        %v424 = vld [vmem:[#allocation9 + $0x1c] sm:$0xf]
        %vm425 = vcmask 97280
        %v427 = vsel %vm425, %v422, 0
        %vm429 = vcmask 1043456
        %v431 = vsel %vm429, %v424, 0
        %433 = vmatprep.subr.mxu0 0.0
        %434 = vmatpush1.msra.mxu0 %v423
        %435 = vmatprep.subr.mxu0 0.0
        %436 = vmatpush1.msra.mxu0 %v431
        %437 = vmatprep.subr.mxu0 0.0
        %438 = vmatpush1.msra.mxu0 0.0
        %439 = vmatprep.subr.mxu0 0.0
        %440 = vmatpush1.msra.mxu0 0.0
        %441 = vmatprep.subr.mxu0 0.0
        %442 = vmatpush1.msra.mxu0 0.0
        %443 = vmatprep.subr.mxu0 0.0
        %444 = vmatpush1.msra.mxu0 0.0
        %445 = vmatprep.subr.mxu0 0.0
        %446 = vmatpush1.msra.mxu0 0.0
        %447 = vmatprep.subr.mxu0 0.0
        %448 = vmatpush1.msra.mxu0 0.0
        %449 = vmatprep.subr.mxu0 0.0
        %450 = vmatpush1.msra.mxu0 0.0
        %451 = vmatprep.subr.mxu0 0.0
        %452 = vmatpush1.msra.mxu0 0.0
        %453 = vmatprep.subr.mxu0 0.0
        %454 = vmatpush1.msra.mxu0 0.0
        %455 = vmatprep.subr.mxu0 0.0
        %456 = vmatpush1.msra.mxu0 0.0
        %457 = vmatprep.subr.mxu0 0.0
        %458 = vmatpush1.msra.mxu0 0.0
        %459 = vmatprep.subr.mxu0 0.0
        %460 = vmatpush1.msra.mxu0 0.0
        %461 = vmatprep.subr.mxu0 0.0
        %462 = vmatpush1.msra.mxu0 0.0
        %463 = vmatprep.subr.mxu0 0.0
        %464 = vmatpush1.msra.mxu0 0.0
        %465 = vmatprep.subr.mxu0 0.0
        %466 = vmatpush1.msra.mxu0 0.0
        %467 = vmatprep.subr.mxu0 0.0
        %468 = vmatpush1.msra.mxu0 0.0
        %469 = vmatprep.subr.mxu0 0.0
        %470 = vmatpush1.msra.mxu0 0.0
        %471 = vmatprep.subr.mxu0 0.0
        %472 = vmatpush1.msra.mxu0 0.0
        %473 = vmatprep.subr.mxu0 0.0
        %474 = vmatpush1.msra.mxu0 0.0
        %475 = vmatprep.subr.mxu0 0.0
        %476 = vmatpush1.msra.mxu0 0.0
        %477 = vmatprep.subr.mxu0 0.0
        %478 = vmatpush1.msra.mxu0 0.0
        %479 = vmatprep.subr.mxu0 0.0
        %480 = vmatpush1.msra.mxu0 0.0
        %481 = vmatprep.subr.mxu0 0.0
        %482 = vmatpush1.msra.mxu0 0.0
        %483 = vmatprep.subr.mxu0 0.0
        %484 = vmatpush1.msra.mxu0 0.0
        %485 = vmatprep.subr.mxu0 0.0
        %486 = vmatpush1.msra.mxu0 0.0
        %487 = vmatprep.subr.mxu0 0.0
        %488 = vmatpush1.msra.mxu0 0.0
        %489 = vmatprep.subr.mxu0 0.0
        %490 = vmatpush1.msra.mxu0 0.0
        %491 = vmatprep.subr.mxu0 0.0
        %492 = vmatpush1.msra.mxu0 0.0
        %493 = vmatprep.subr.mxu0 0.0
        %494 = vmatpush1.msra.mxu0 0.0
        %495 = vmatprep.subr.mxu0 0.0
        %496 = vmatpush1.msra.mxu0 0.0
        %497 = vmatprep.mubr.f32.mxu0 0.0
        %498 = vmatmul.mubr.f32.gmra.mrb[0].mxu0 %v427
        %v499 = vpop.f32.mrb[0].mxu0
        %v500 = vadd.f32 0.0, %v499
        %v501 = vpop.f32.mrb[0].mxu0
        %502 = vdwg.mxu0
        %vm503 = vcmask 162816
        %v505 = vsel %vm503, %v418, 0
        %v508 = vsel %vm429, %v421, 0
        %510 = vmatprep.subr.mxu0 0.0
        %511 = vmatpush1.msra.mxu0 %v419
        %512 = vmatprep.subr.mxu0 0.0
        %513 = vmatpush1.msra.mxu0 %v420
        %514 = vmatprep.subr.mxu0 0.0
        %515 = vmatpush1.msra.mxu0 %v508
        %516 = vmatprep.subr.mxu0 0.0
        %517 = vmatpush1.msra.mxu0 0.0
        %518 = vmatprep.subr.mxu0 0.0
        %519 = vmatpush1.msra.mxu0 0.0
        %520 = vmatprep.subr.mxu0 0.0
        %521 = vmatpush1.msra.mxu0 0.0
        %522 = vmatprep.subr.mxu0 0.0
        %523 = vmatpush1.msra.mxu0 0.0
        %524 = vmatprep.subr.mxu0 0.0
        %525 = vmatpush1.msra.mxu0 0.0
        %526 = vmatprep.subr.mxu0 0.0
        %527 = vmatpush1.msra.mxu0 0.0
        %528 = vmatprep.subr.mxu0 0.0
        %529 = vmatpush1.msra.mxu0 0.0
        %530 = vmatprep.subr.mxu0 0.0
        %531 = vmatpush1.msra.mxu0 0.0
        %532 = vmatprep.subr.mxu0 0.0
        %533 = vmatpush1.msra.mxu0 0.0
        %534 = vmatprep.subr.mxu0 0.0
        %535 = vmatpush1.msra.mxu0 0.0
        %536 = vmatprep.subr.mxu0 0.0
        %537 = vmatpush1.msra.mxu0 0.0
        %538 = vmatprep.subr.mxu0 0.0
        %539 = vmatpush1.msra.mxu0 0.0
        %540 = vmatprep.subr.mxu0 0.0
        %541 = vmatpush1.msra.mxu0 0.0
        %542 = vmatprep.subr.mxu0 0.0
        %543 = vmatpush1.msra.mxu0 0.0
        %544 = vmatprep.subr.mxu0 0.0
        %545 = vmatpush1.msra.mxu0 0.0
        %546 = vmatprep.subr.mxu0 0.0
        %547 = vmatpush1.msra.mxu0 0.0
        %548 = vmatprep.subr.mxu0 0.0
        %549 = vmatpush1.msra.mxu0 0.0
        %550 = vmatprep.subr.mxu0 0.0
        %551 = vmatpush1.msra.mxu0 0.0
        %552 = vmatprep.subr.mxu0 0.0
        %553 = vmatpush1.msra.mxu0 0.0
        %554 = vmatprep.subr.mxu0 0.0
        %555 = vmatpush1.msra.mxu0 0.0
        %556 = vmatprep.subr.mxu0 0.0
        %557 = vmatpush1.msra.mxu0 0.0
        %558 = vmatprep.subr.mxu0 0.0
        %559 = vmatpush1.msra.mxu0 0.0
        %560 = vmatprep.subr.mxu0 0.0
        %561 = vmatpush1.msra.mxu0 0.0
        %562 = vmatprep.subr.mxu0 0.0
        %563 = vmatpush1.msra.mxu0 0.0
        %564 = vmatprep.subr.mxu0 0.0
        %565 = vmatpush1.msra.mxu0 0.0
        %566 = vmatprep.subr.mxu0 0.0
        %567 = vmatpush1.msra.mxu0 0.0
        %568 = vmatprep.subr.mxu0 0.0
        %569 = vmatpush1.msra.mxu0 0.0
        %570 = vmatprep.subr.mxu0 0.0
        %571 = vmatpush1.msra.mxu0 0.0
        %572 = vmatprep.subr.mxu0 0.0
        %573 = vmatpush1.msra.mxu0 0.0
        %574 = vmatprep.mubr.f32.mxu0 0.0
        %575 = vmatmul.mubr.f32.gmra.mrb[0].mxu0 %v505
        %v576 = vpop.f32.mrb[0].mxu0
        %v577 = vadd.f32 %v500, %v576
        %v578 = vpop.f32.mrb[0].mxu0
        %579 = vdwg.mxu0
        %v580 = vlaneseq
        %v581 = vshrl.u32 %v580, 7
        %v582 = vsub.s32 0, %v581
        %v583 = vrot.slane %v417, %v582
        %v584 = vadd.f32 %v577, %v583
        %v585 = vmax.f32 %v584, 0.0
        %v586 = vld [vmem:[%s5] sm:$0x1]
        %v587 = vld [vmem:[#allocation11] sm:$0xff]
        %v588 = vld [vmem:[#allocation11 + $0x8] sm:$0xff]
        %v589 = vld [vmem:[#allocation11 + $0x10] sm:$0xff]
        %v590 = vld [vmem:[#allocation11 + $0x18] sm:$0xff]
        %v591 = vld [vmem:[#allocation11 + $0x20] sm:$0xff]
        %v592 = vld [vmem:[#allocation11 + $0x28] sm:$0xff]
        %v593 = vld [vmem:[#allocation11 + $0x30] sm:$0xff]
        %v594 = vld [vmem:[#allocation11 + $0x38] sm:$0xff]
        %vm595 = vcmask 261120
        %v597 = vsel %vm595, %v416, 0
        %599 = vmatprep.subr.mxu0 0.0
        %600 = vmatpush1.msra.mxu0 %v591
        %601 = vmatprep.subr.mxu0 0.0
        %602 = vmatpush1.msra.mxu0 %v592
        %603 = vmatprep.subr.mxu0 0.0
        %604 = vmatpush1.msra.mxu0 %v593
        %605 = vmatprep.subr.mxu0 0.0
        %606 = vmatpush1.msra.mxu0 %v594
        %607 = vmatprep.subr.mxu0 0.0
        %608 = vmatpush1.msra.mxu0 0.0
        %609 = vmatprep.subr.mxu0 0.0
        %610 = vmatpush1.msra.mxu0 0.0
        %611 = vmatprep.subr.mxu0 0.0
        %612 = vmatpush1.msra.mxu0 0.0
        %613 = vmatprep.subr.mxu0 0.0
        %614 = vmatpush1.msra.mxu0 0.0
        %615 = vmatprep.subr.mxu0 0.0
        %616 = vmatpush1.msra.mxu0 0.0
        %617 = vmatprep.subr.mxu0 0.0
        %618 = vmatpush1.msra.mxu0 0.0
        %619 = vmatprep.subr.mxu0 0.0
        %620 = vmatpush1.msra.mxu0 0.0
        %621 = vmatprep.subr.mxu0 0.0
        %622 = vmatpush1.msra.mxu0 0.0
        %623 = vmatprep.subr.mxu0 0.0
        %624 = vmatpush1.msra.mxu0 0.0
        %625 = vmatprep.subr.mxu0 0.0
        %626 = vmatpush1.msra.mxu0 0.0
        %627 = vmatprep.subr.mxu0 0.0
        %628 = vmatpush1.msra.mxu0 0.0
        %629 = vmatprep.subr.mxu0 0.0
        %630 = vmatpush1.msra.mxu0 0.0
        %631 = vmatprep.subr.mxu0 0.0
        %632 = vmatpush1.msra.mxu0 0.0
        %633 = vmatprep.subr.mxu0 0.0
        %634 = vmatpush1.msra.mxu0 0.0
        %635 = vmatprep.subr.mxu0 0.0
        %636 = vmatpush1.msra.mxu0 0.0
        %637 = vmatprep.subr.mxu0 0.0
        %638 = vmatpush1.msra.mxu0 0.0
        %639 = vmatprep.subr.mxu0 0.0
        %640 = vmatpush1.msra.mxu0 0.0
        %641 = vmatprep.subr.mxu0 0.0
        %642 = vmatpush1.msra.mxu0 0.0
        %643 = vmatprep.subr.mxu0 0.0
        %644 = vmatpush1.msra.mxu0 0.0
        %645 = vmatprep.subr.mxu0 0.0
        %646 = vmatpush1.msra.mxu0 0.0
        %647 = vmatprep.subr.mxu0 0.0
        %648 = vmatpush1.msra.mxu0 0.0
        %649 = vmatprep.subr.mxu0 0.0
        %650 = vmatpush1.msra.mxu0 0.0
        %651 = vmatprep.subr.mxu0 0.0
        %652 = vmatpush1.msra.mxu0 0.0
        %653 = vmatprep.subr.mxu0 0.0
        %654 = vmatpush1.msra.mxu0 0.0
        %655 = vmatprep.subr.mxu0 0.0
        %656 = vmatpush1.msra.mxu0 0.0
        %657 = vmatprep.subr.mxu0 0.0
        %658 = vmatpush1.msra.mxu0 0.0
        %659 = vmatprep.subr.mxu0 0.0
        %660 = vmatpush1.msra.mxu0 0.0
        %661 = vmatprep.subr.mxu0 0.0
        %662 = vmatpush1.msra.mxu0 0.0
        %663 = vmatprep.mubr.f32.mxu0 0.0
        %664 = vmatmul.mubr.f32.gmra.mrb[0].mxu0 %v597
        %v665 = vpop.f32.mrb[0].mxu0
        %v666 = vadd.f32 0.0, %v665
        %v667 = vpop.f32.mrb[0].mxu0
        %668 = vdwg.mxu0
        %v670 = vsel %vm595, %v585, 0
        %672 = vmatprep.subr.mxu0 0.0
        %673 = vmatpush1.msra.mxu0 %v587
        %674 = vmatprep.subr.mxu0 0.0
        %675 = vmatpush1.msra.mxu0 %v588
        %676 = vmatprep.subr.mxu0 0.0
        %677 = vmatpush1.msra.mxu0 %v589
        %678 = vmatprep.subr.mxu0 0.0
        %679 = vmatpush1.msra.mxu0 %v590
        %680 = vmatprep.subr.mxu0 0.0
        %681 = vmatpush1.msra.mxu0 0.0
        %682 = vmatprep.subr.mxu0 0.0
        %683 = vmatpush1.msra.mxu0 0.0
        %684 = vmatprep.subr.mxu0 0.0
        %685 = vmatpush1.msra.mxu0 0.0
        %686 = vmatprep.subr.mxu0 0.0
        %687 = vmatpush1.msra.mxu0 0.0
        %688 = vmatprep.subr.mxu0 0.0
        %689 = vmatpush1.msra.mxu0 0.0
        %690 = vmatprep.subr.mxu0 0.0
        %691 = vmatpush1.msra.mxu0 0.0
        %692 = vmatprep.subr.mxu0 0.0
        %693 = vmatpush1.msra.mxu0 0.0
        %694 = vmatprep.subr.mxu0 0.0
        %695 = vmatpush1.msra.mxu0 0.0
        %696 = vmatprep.subr.mxu0 0.0
        %697 = vmatpush1.msra.mxu0 0.0
        %698 = vmatprep.subr.mxu0 0.0
        %699 = vmatpush1.msra.mxu0 0.0
        %700 = vmatprep.subr.mxu0 0.0
        %701 = vmatpush1.msra.mxu0 0.0
        %702 = vmatprep.subr.mxu0 0.0
        %703 = vmatpush1.msra.mxu0 0.0
        %704 = vmatprep.subr.mxu0 0.0
        %705 = vmatpush1.msra.mxu0 0.0
        %706 = vmatprep.subr.mxu0 0.0
        %707 = vmatpush1.msra.mxu0 0.0
        %708 = vmatprep.subr.mxu0 0.0
        %709 = vmatpush1.msra.mxu0 0.0
        %710 = vmatprep.subr.mxu0 0.0
        %711 = vmatpush1.msra.mxu0 0.0
        %712 = vmatprep.subr.mxu0 0.0
        %713 = vmatpush1.msra.mxu0 0.0
        %714 = vmatprep.subr.mxu0 0.0
        %715 = vmatpush1.msra.mxu0 0.0
        %716 = vmatprep.subr.mxu0 0.0
        %717 = vmatpush1.msra.mxu0 0.0
        %718 = vmatprep.subr.mxu0 0.0
        %719 = vmatpush1.msra.mxu0 0.0
        %720 = vmatprep.subr.mxu0 0.0
        %721 = vmatpush1.msra.mxu0 0.0
        %722 = vmatprep.subr.mxu0 0.0
        %723 = vmatpush1.msra.mxu0 0.0
        %724 = vmatprep.subr.mxu0 0.0
        %725 = vmatpush1.msra.mxu0 0.0
        %726 = vmatprep.subr.mxu0 0.0
        %727 = vmatpush1.msra.mxu0 0.0
        %728 = vmatprep.subr.mxu0 0.0
        %729 = vmatpush1.msra.mxu0 0.0
        %730 = vmatprep.subr.mxu0 0.0
        %731 = vmatpush1.msra.mxu0 0.0
        %732 = vmatprep.subr.mxu0 0.0
        %733 = vmatpush1.msra.mxu0 0.0
        %734 = vmatprep.subr.mxu0 0.0
        %735 = vmatpush1.msra.mxu0 0.0
        %736 = vmatprep.mubr.f32.mxu0 0.0
        %737 = vmatmul.mubr.f32.gmra.mrb[0].mxu0 %v670
        %v738 = vpop.f32.mrb[0].mxu0
        %v739 = vadd.f32 %v666, %v738
        %v740 = vpop.f32.mrb[0].mxu0
        %741 = vdwg.mxu0
        %v742 = vlaneseq
        %v743 = vshrl.u32 %v742, 7
        %v744 = vsub.s32 0, %v743
        %v745 = vrot.slane %v586, %v744
        %v746 = vadd.f32 %v739, %v745
        %v747 = vxor.u32 %v746, 2147483648
        %v748 = vmul.f32 %v747, 1.442695
        %v749 = vpow.pop %v748
        %v750 = vadd.f32 %v749, 1.0
        %v751 = vrcp.pop %v750
        %v752 = vmul.f32 1.0, %v751
        %754 = vrot.lane.b32.xlu0 %v746, 32
        %v755 = vpop.permute.xlu0 %754
        %v757 = vmul.f32 %v752, %v755
        %759 = vrot.lane.b32.xlu0 %v757, 64
        %v760 = vpop.permute.xlu0 %759
        %v762 = vadd.f32 %v746, %v760
        %v763 = vtanh.pop %v762
        %765 = vrot.lane.b32.xlu0 %v763, 64
        %v766 = vpop.permute.xlu0 %765
        %v768 = vsub.f32 %v416, %v766
        %770 = vrot.lane.b32.xlu0 %v768, 32
        %v771 = vpop.permute.xlu0 %770
        %v773 = vmul.f32 %v752, %v771
        %775 = vrot.lane.b32.xlu0 %v773, 32
        %v776 = vpop.permute.xlu0 %775
        %v778 = vadd.f32 %v763, %v776
        %780 = vrot.lane.b32.xlu0 %v778, 64
        %v781 = vpop.permute.xlu0 %780
        %783 = vst.msk [vmem:[#allocation2] sm:$0xff] %vm595, %v781
        %v784 = vld [vmem:[%s5 + $0x1] sm:$0x1]
        %v785 = vlaneseq
        %v786 = vshrl.u32 %v785, 7
        %v787 = vsub.s32 0, %v786
        %v788 = vrot.slane %v784, %v787
        %790 = vrot.lane.b32.xlu0 %v788, 32
        %v791 = vpop.permute.xlu0 %790
        %v793 = vmul.f32 %v778, %v791
        %795 = vrot.lane.b32.xlu0 %v793, 64
        %v796 = vpop.permute.xlu0 %795
        %v798 = vsel %vm595, %v796, 0.0
        %799 = vadd.xlane.f32.xlu0 %v798
        %v800 = vpop.xlane.xlu0 %799
        %v801 = vadd.f32 %v800, %v788
        %803 = vrot.lane.b32.xlu0 %v801, 64
        %v804 = vpop.permute.xlu0 %803
        %vm806 = vcmask 7168
        %807 = vst.msk [vmem:[%s408] sm:$0xff] %vm806, %v804
        %808 = vst.msk [vmem:[#allocation12] sm:$0xff] %vm595, %v781
        %p809 = scmp.lt.s32.totalorder %s32, 5
        %s810 = scalar_select %p809, %s32, 5
        %p811 = scmp.lt.s32.totalorder %s31, 0
        %s812 = scalar_select %p811, %s31, 0
        %s813 = sadd.s32 %s812, %s810
        %s814 = smul.addr %s813, 8
        %s815 = scalar_lea.vmem %s6, %s814
        // Predicated region
        $region69: #{tpu_custom_call.1} parent=43 // pred_check
          %p816 = pneg %p204
        $region70: #{tpu_custom_call.1} parent=43 // pred_check_branch
          %818 = sbr.rel (%p816) target = $region72
        $region71: #{tpu_custom_call.1} parent=43 // pred_region
          _
        $region72: #{tpu_custom_call.1} parent=43 // pred_fallthru
          _
        // Predicated region
        $region73: #{tpu_custom_call.1} parent=43 // pred_check
          %p819 = pneg %p230
        $region74: #{tpu_custom_call.1} parent=43 // pred_check_branch
          %821 = sbr.rel (%p819) target = $region76
        $region75: #{tpu_custom_call.1} parent=43 // pred_region
          %s823 = ssub.s32 128, 128
          %824 = vsyncadd [#allocation5], %s823
          %s825 = smul.addr %s31, 128
          %s826 = scalar_lea.hbm %s7, %s825
          %s828 = sshll.u32 [#allocation12], 4
          %s829 = int_to_ptr.vmem [resolvable:$true] %s828
          %831 = dma.vmem_to_hbm [thread:$0]  %s829, 128, %s826, [#allocation5]
        $region76: #{tpu_custom_call.1} parent=43 // pred_fallthru
          _
        // Predicated region
        $region77: #{tpu_custom_call.1} parent=43 // pred_check
          %p832 = pneg %p230
        $region78: #{tpu_custom_call.1} parent=43 // pred_check_branch
          %834 = sbr.rel (%p832) target = $region80
        $region79: #{tpu_custom_call.1} parent=43 // pred_region
          %835 = dma.done [#allocation5], 128
        $region80: #{tpu_custom_call.1} parent=43 // pred_fallthru
          _
      $region44: #{tpu_custom_call.1} parent=5 // pred_fallthru
        _
      %p836 = scmp.le.s32.totalorder 2, %s22
      // Predicated region
      $region81: #{tpu_custom_call.1} parent=5 // pred_check
        %p837 = pneg %p836
      $region82: #{tpu_custom_call.1} parent=5 // pred_check_branch
        %839 = sbr.rel (%p837) target = $region84
      $region83: #{tpu_custom_call.1} parent=5 // pred_region
        %s840 = ssub.s32 %s22, 2
        // Predicated region
        $region85: #{tpu_custom_call.1} parent=83 // pred_check
          %p841 = pneg %p210
        $region86: #{tpu_custom_call.1} parent=83 // pred_check_branch
          %843 = sbr.rel (%p841) target = $region88
        $region87: #{tpu_custom_call.1} parent=83 // pred_region
          %p844 = scmp.lt.s32.totalorder %s34, 5
          %s845 = scalar_select %p844, %s34, 5
          %p846 = scmp.lt.s32.totalorder %s33, 0
          %s847 = scalar_select %p846, %s33, 0
          %s848 = sadd.s32 %s847, %s845
          %s849 = smul.addr %s848, 8
          %s850 = scalar_lea.vmem %s6, %s849
        $region88: #{tpu_custom_call.1} parent=83 // pred_fallthru
          _
      $region84: #{tpu_custom_call.1} parent=5 // pred_fallthru
        _
    $region6: #{tpu_custom_call.1} parent=1 // loop_footer
      %s26 = sadd.s32 1, %s22
    $region7: #{tpu_custom_call.1} parent=1 // loop_footer_branch
      %21 = sbr.rel target = $region3
    $region8: #{tpu_custom_call.1} parent=1 // loop_exit
      _
    %851 = vsyncpa [#allocation4], 1
    %s852 = scalar_lea.sflag [#allocation4], 1
    %853 = vsyncpa %s852, 1
    %854 = vsyncpa [#allocation7], 1
    %s855 = scalar_lea.sflag [#allocation7], 1
    %856 = vsyncpa %s855, 1
    %857 = vsyncpa [#allocation10], 1
    %858 = vsyncpa [#allocation5], 1
    %s859 = scalar_lea.sflag [#allocation5], 1
    %860 = vsyncpa %s859, 1

</llo_original>
